<compile_context>
chip_gen: v6e
topology: v6e:2x2x1
jax: 0.10.0
libtpu: 0.0.40
codegen_flags: <defaults>
</compile_context>

<pallas_src>
import functools

import numpy as np
import jax
import jax.numpy as jnp
from jax.experimental import pallas as pl
from jax.experimental.pallas import tpu as pltpu


def _round_up(n, m):
    return ((n + m - 1) // m) * m


def _bca_kernel(alpha_ref, x_ref, bvec_ref, o_ref):
    """Elementwise flow field on a lane-dense folded layout.

    alpha_ref : (1,)        f32 in SMEM (learnable scalar parameter)
    x_ref     : (TB, LANES) in VMEM (input dtype; LANES = fold * dim)
    bvec_ref  : (1,  LANES) f32 in VMEM (bounds on BCA lanes, 0 on residual lanes)
    o_ref     : (TB, LANES) in VMEM (same dtype as x)
    """
    x = x_ref[...].astype(jnp.float32)
    alpha = alpha_ref[0]
    bvec = bvec_ref[...]                                   # (1, LANES), broadcasts
    o_ref[...] = (alpha * (x - jnp.clip(x, -bvec, bvec))).astype(o_ref.dtype)


def _flow_jnp(x, alpha, *, bca_dim, bounds):
    """Exact masked PyTorch form (used for the small-problem bypass and as reference)."""
    x_bca = x[:, :bca_dim]
    projected = jnp.clip(x_bca, -bounds, bounds)
    mask = (x_bca < -bounds) | (x_bca > bounds)
    flow_bca = jnp.where(mask, -alpha * (projected - x_bca), jnp.zeros_like(x_bca))
    if x.shape[1] > bca_dim:
        residual = x[:, bca_dim:]
        return jnp.concatenate([flow_bca, (alpha * residual).astype(x.dtype)],
                               axis=-1).astype(x.dtype)
    return flow_bca.astype(x.dtype)


def bounded_continuous_attractor_flow(x, alpha, *, bca_dim, bounds=1.0,
                                      target_rows=8192, force_pallas=False,
                                      min_pallas_bytes=256 * 1024):
    """LearnableBoundedContinuousAttractor.forward(t, x) via Pallas.

    x     : (B, D) or (D,)    float32 or bfloat16
    alpha : python float or scalar jnp array (learnable parameter value)
    Returns the flow with the same shape/dtype as x.
    """
    squeeze_back = (x.ndim == 1)
    if squeeze_back:
        x = x[None, :]
    B, D = x.shape
    alpha = jnp.asarray(alpha, dtype=jnp.float32)

    # Small-problem bypass: pallas_call launch overhead dwarfs a few vregs of compute.
    if (not force_pallas) and (B * D * x.dtype.itemsize < min_pallas_bytes):
        out = _flow_jnp(x, alpha, bca_dim=bca_dim, bounds=bounds)
        return out[0] if squeeze_back else out

    # Lane-dense fold: pack `fold` batch rows per folded row so stores are full 128-lane.
    fold = 128 // D if (D <= 128 and 128 % D == 0) else 1
    lanes = fold * D

    pad = (-B) % fold                      # <= fold-1 rows (0 on the fast path)
    x_p = jnp.pad(x, ((0, pad), (0, 0))) if pad else x
    R = (B + pad) // fold
    x_f = x_p.reshape(R, lanes)            # free bitcast (row-major)

    # Tile rows: as large as useful, multiple of 16 (bf16 sublane packing), no
    # pad-to-tile rounding of the array — the boundary block is masked by Pallas.
    tb = max(16, min(_round_up(int(target_rows), 16), _round_up(R, 16)))
    grid = (pl.cdiv(R, tb),)

    # Per-lane bounds vector: `bounds` on BCA lanes, 0 on residual lanes.
    seg = np.zeros((D,), np.float32)
    seg[: int(bca_dim)] = float(bounds)
    bvec = jnp.asarray(np.tile(seg, fold)[None, :])        # (1, lanes) f32

    alpha_arr = alpha.reshape(1)
    itemsize = x.dtype.itemsize

    out_f = pl.pallas_call(
        _bca_kernel,
        out_shape=jax.ShapeDtypeStruct((R, lanes), x.dtype),
        grid=grid,
        in_specs=[
            pl.BlockSpec(memory_space=pltpu.SMEM),           # alpha scalar, untiled
            pl.BlockSpec((tb, lanes), lambda i: (i, 0)),     # x tile
            pl.BlockSpec((1, lanes), lambda i: (0, 0)),      # per-lane bounds (resident)
        ],
        out_specs=pl.BlockSpec((tb, lanes), lambda i: (i, 0)),
        compiler_params=pltpu.CompilerParams(
            dimension_semantics=("parallel",),
            vmem_limit_bytes=48 * 1024 * 1024,               # fits v7x's 64 MiB physical
        ),
        cost_estimate=pl.CostEstimate(
            flops=5 * R * lanes,                             # clip(2) + sub + mul + cast
            transcendentals=0,
            bytes_accessed=2 * R * lanes * itemsize + lanes * 4,
        ),
    )(alpha_arr, x_f, bvec)

    out = out_f.reshape(R * fold, D)
    if pad:
        out = out[:B]
    if squeeze_back:
        out = out[0]
    return out


def phi_system_forward(t, x, alpha, *, bca_dim, bounds=1.0, **kw):
    """PhiSystem.forward: diffeomorphism(base_system(t, x)), then squeeze(0).

    base_system = bounded continuous attractor flow (kernel above),
    diffeomorphism_network = identity (see TODO at top of file).
    """
    del t  # autonomous flow field; time unused
    if x.ndim == 1:
        x = x[None, :]
    dx_dt = bounded_continuous_attractor_flow(x, alpha, bca_dim=bca_dim,
                                              bounds=bounds, **kw)
    # torch's .squeeze(0): drop leading dim iff it is size 1
    if dx_dt.shape[0] == 1:
        dx_dt = dx_dt[0]
    return dx_dt


def _reference_flow(x, alpha, *, bca_dim, bounds=1.0):
    """Pure-JAX f32 reference (mirrors the PyTorch forward, masked form)."""
    if x.ndim == 1:
        x = x[None, :]
    x = x.astype(jnp.float32)
    x_bca = x[:, :bca_dim]
    projected = jnp.clip(x_bca, -bounds, bounds)
    mask = (x_bca < -bounds) | (x_bca > bounds)
    flow_bca = jnp.where(mask, -alpha * (projected - x_bca), jnp.zeros_like(x_bca))
    if x.shape[1] > bca_dim:
        residual = x[:, bca_dim:]
        return jnp.concatenate([flow_bca, alpha * residual], axis=-1)
    return flow_bca


if __name__ == "__main__":
    # Module config (synthetic, deterministic): dim=32 state, first 8 dims are the
    # bounded continuous attractor, rest is a linear residual subspace.
    dim = 32
    bca_dim = 8
    bounds = 1.0
    alpha_init = 0.75    # learnable nn.Parameter value, initialized in-script

    key = jax.random.PRNGKey(0)
    k_small, k_mid, k_large = jax.random.split(key, 3)
    alpha = jnp.float32(alpha_init)

    # --- tiny ODE-step shape (module's intended usage): small-problem bypass ------
    batch = 8
    x = 2.5 * jax.random.normal(k_small, (batch, dim), dtype=jnp.float32)
    flow = phi_system_forward(jnp.float32(0.0), x, alpha_init,
                              bca_dim=bca_dim, bounds=bounds)
    flow = jax.block_until_ready(flow)
    ref = _reference_flow(x, alpha, bca_dim=bca_dim, bounds=bounds)
    assert flow.shape == (batch, dim)
    assert jnp.allclose(flow, ref, atol=1e-6, rtol=1e-6), "mismatch (tiny / bypass)"

    # --- small Pallas-path shape: exercises pad-by-3 rows + masked boundary block --
    batch_m = 501                                  # 501 % 4 == 1 -> pad 3 batch rows
    x_m = 2.5 * jax.random.normal(k_mid, (batch_m, dim), dtype=jnp.float32)
    flow_m = bounded_continuous_attractor_flow(
        x_m, alpha_init, bca_dim=bca_dim, bounds=bounds, force_pallas=True)
    flow_m = jax.block_until_ready(flow_m)
    ref_m = _reference_flow(x_m, alpha, bca_dim=bca_dim, bounds=bounds)
    assert flow_m.shape == (batch_m, dim)
    assert jnp.allclose(flow_m, ref_m, atol=1e-6, rtol=1e-6), "mismatch (small Pallas)"

    # --- larger batch, fast path (B % fold == 0: no pad, free reshape) ------------
    batch_l = 6000
    x_l = 2.5 * jax.random.normal(k_large, (batch_l, dim), dtype=jnp.float32)
    flow_l = bounded_continuous_attractor_flow(
        x_l, alpha_init, bca_dim=bca_dim, bounds=bounds)
    flow_l = jax.block_until_ready(flow_l)
    ref_l = _reference_flow(x_l, alpha, bca_dim=bca_dim, bounds=bounds)
    assert flow_l.shape == (batch_l, dim)
    assert jnp.allclose(flow_l, ref_l, atol=1e-6, rtol=1e-6), "mismatch (large)"

    # --- same data, forced multi-step grid (grid > 1) with a masked boundary block -
    flow_g = bounded_continuous_attractor_flow(
        x_l, alpha_init, bca_dim=bca_dim, bounds=bounds, target_rows=256)
    flow_g = jax.block_until_ready(flow_g)
    assert jnp.allclose(flow_g, ref_l, atol=1e-6, rtol=1e-6), "mismatch (multi-block)"

    # --- bf16 I/O path (halved HBM bytes; f32 compute inside the kernel) ----------
    x_b = x_l.astype(jnp.bfloat16)
    flow_b = bounded_continuous_attractor_flow(
        x_b, alpha_init, bca_dim=bca_dim, bounds=bounds)
    flow_b = jax.block_until_ready(flow_b)
    assert flow_b.dtype == jnp.bfloat16 and flow_b.shape == (batch_l, dim)
    ref_b = _reference_flow(x_b, alpha, bca_dim=bca_dim, bounds=bounds)
    assert jnp.allclose(flow_b.astype(jnp.float32), ref_b, atol=5e-2, rtol=2e-2), \
        "mismatch (bf16)"

    print("KERNEL_OK")
</pallas_src>

<mosaic_0001>
module attributes {stable_mosaic.version = 11 : i64} {
  func.func @_bca_kernel(%arg0: i32, %arg1: memref<1xf32, #tpu.memory_space<smem>>, %arg2: memref<128x128xf32, #tpu.memory_space<vmem>>, %arg3: memref<1x128xf32, #tpu.memory_space<vmem>>, %arg4: memref<128x128xf32, #tpu.memory_space<vmem>>) attributes {dimension_semantics = [#tpu.dimension_semantics<parallel>], iteration_bounds = array<i64: 1>, scalar_prefetch = 0 : i64, scratch_operands = 0 : i64, tpu.core_type = #tpu.core_type<tc>, window_params = [{transform_indices = @transform_0, window_bounds = array<i64: 1>}, {transform_indices = @transform_1, window_bounds = array<i64: 128, 128>}, {pipeline_mode = #tpu.pipeline_mode<synchronous>, transform_indices = @transform_2, window_bounds = array<i64: 1, 128>}, {transform_indices = @transform_3, window_bounds = array<i64: 128, 128>}]} {
    %c0 = arith.constant 0 : index
    %c0_0 = arith.constant 0 : index
    %0 = vector.load %arg2[%c0, %c0_0] : memref<128x128xf32, #tpu.memory_space<vmem>>, vector<128x128xf32>
    %c0_1 = arith.constant 0 : index
    %1 = memref.load %arg1[%c0_1] : memref<1xf32, #tpu.memory_space<smem>>
    %c0_2 = arith.constant 0 : index
    %c0_3 = arith.constant 0 : index
    %2 = vector.load %arg3[%c0_2, %c0_3] : memref<1x128xf32, #tpu.memory_space<vmem>>, vector<1x128xf32>
    %cst = arith.constant 0.000000e+00 : f32
    %3 = vector.broadcast %cst : f32 to vector<1x128xf32>
    %4 = arith.subf %3, %2 : vector<1x128xf32>
    %5 = vector.broadcast %4 : vector<1x128xf32> to vector<128x128xf32>
    %6 = arith.maximumf %5, %0 : vector<128x128xf32>
    %7 = vector.broadcast %2 : vector<1x128xf32> to vector<128x128xf32>
    %8 = arith.minimumf %7, %6 : vector<128x128xf32>
    %9 = arith.subf %0, %8 : vector<128x128xf32>
    %10 = vector.broadcast %1 : f32 to vector<128x128xf32>
    %11 = arith.mulf %10, %9 : vector<128x128xf32>
    %c0_4 = arith.constant 0 : index
    %c0_5 = arith.constant 0 : index
    %12 = vector.load %arg4[%c0_4, %c0_5] : memref<128x128xf32, #tpu.memory_space<vmem>>, vector<128x128xf32>
    tpu.vector_store %arg4[%c0_4, %c0_5], %11 {strides = array<i32>} : memref<128x128xf32, #tpu.memory_space<vmem>>, vector<128x128xf32>,
    return
  }
  func.func @transform_0(%arg0: i32) -> i32 {
    %c0_i32 = arith.constant 0 : i32
    %c0_i32_0 = arith.constant 0 : i32
    return %c0_i32 : i32
  }
  func.func @transform_1(%arg0: i32) -> (i32, i32) {
    %c0_i32 = arith.constant 0 : i32
    %c0_i32_0 = arith.constant 0 : i32
    return %arg0, %c0_i32 : i32, i32
  }
  func.func @transform_2(%arg0: i32) -> (i32, i32) {
    %c0_i32 = arith.constant 0 : i32
    %c0_i32_0 = arith.constant 0 : i32
    %c0_i32_1 = arith.constant 0 : i32
    return %c0_i32, %c0_i32_0 : i32, i32
  }
  func.func @transform_3(%arg0: i32) -> (i32, i32) {
    %c0_i32 = arith.constant 0 : i32
    %c0_i32_0 = arith.constant 0 : i32
    return %arg0, %c0_i32 : i32, i32
  }
}

</mosaic_0001>

<llo_original>
// kernel: tpu_custom_call.1
$region0: #{tpu_custom_call.1}
  #allocation0 [shape = 'u32[]', space=smem, size = 0x4, offset = 0x4, fixed_abs, tag = 'smem constant byte address 0x4 - core index']
  #allocation1 [shape = 'u32[144,128]{1,0:T(1,128)}', space=vmem, size = 0x12000, scoped, tag = 'internal scratch']
  #allocation2 [shape = 'f32[1]{0:T(128)S(6)}', space=smem, size = 0x200, scoped, tag = 'scoped memory for tpu_custom_call.1']
  %s0 = inlined_call_operand.<no memory space> [shape: f32[1], index: 0, kind: input, shape index: {}]
  %s1 = inlined_call_operand.hbm [shape: f32[126,128], index: 1, kind: input, shape index: {}]
  %s2 = inlined_call_operand.vmem [shape: f32[1,128], index: 2, kind: input, shape index: {}]
  %s3 = inlined_call_operand.hbm [shape: f32[126,128], index: 3, kind: output, shape index: {}]
  %s4 = sld [smem:[#allocation0]]
  $region26: #{tpu_custom_call.1} parent=0
    _
  %s6 = ssub.s32 1, %s4
  %s7 = scalar_select 0, %s6, %s4
  %8 = sst [smem:[#allocation2]] %s0
  $region1: #{tpu_custom_call.1} parent=0
    #allocation3 [shape = 'u8[65536]{0}', space=vmem, size = 0x10000, scoped, tag = 'input window, operand 1, single buffered']
    #allocation4 [shape = 's32[1]{0}', space=sflag, size = 0x4, scoped, tag = 'scoped memory for tpu_custom_call.1']
    #allocation5 [shape = 's32[1]{0}', space=sflag, size = 0x4, scoped, tag = 'scoped memory for tpu_custom_call.1']
    #allocation6 [shape = 'u8[65536]{0}', space=vmem, size = 0x10000, scoped, tag = 'output window, operand 0, single buffered']
    %9 = vsyncpa [#allocation4], 0
    %10 = vsyncpa [#allocation5], 0
    // Predicated region
    $region2: #{tpu_custom_call.1} parent=1 // pred_check
      _
    $region3: #{tpu_custom_call.1} parent=1 // pred_check_branch
      %12 = sbr.rel (0) target = $region5
    $region4: #{tpu_custom_call.1} parent=1 // pred_region
      _
    $region5: #{tpu_custom_call.1} parent=1 // pred_fallthru
      _
    // Predicated region
    $region6: #{tpu_custom_call.1} parent=1 // pred_check
      _
    $region7: #{tpu_custom_call.1} parent=1 // pred_check_branch
      %14 = sbr.rel (0) target = $region9
    $region8: #{tpu_custom_call.1} parent=1 // pred_region
      %s16 = ssub.s32 2048, 2048
      %17 = vsyncadd [#allocation4], %s16
      %s18 = sshll.u32 [#allocation3], 4
      %s19 = int_to_ptr.vmem [resolvable:$true] %s18
      %24 = dma.hbm_to_vmem [thread:$0]  %s1, 2048, %s19, [#allocation4], 128, 128, 8
    $region9: #{tpu_custom_call.1} parent=1 // pred_fallthru
      _
    // Predicated region
    $region10: #{tpu_custom_call.1} parent=1 // pred_check
      _
    $region11: #{tpu_custom_call.1} parent=1 // pred_check_branch
      %26 = sbr.rel (0) target = $region13
    $region12: #{tpu_custom_call.1} parent=1 // pred_region
      _
    $region13: #{tpu_custom_call.1} parent=1 // pred_fallthru
      _
    // Predicated region
    $region14: #{tpu_custom_call.1} parent=1 // pred_check
      _
    $region15: #{tpu_custom_call.1} parent=1 // pred_check_branch
      %28 = sbr.rel (0) target = $region17
    $region16: #{tpu_custom_call.1} parent=1 // pred_region
      %29 = dma.done [#allocation4], 2048
    $region17: #{tpu_custom_call.1} parent=1 // pred_fallthru
      _
    %v30 = vld [vmem:[#allocation3] sm:$0xff]
    %v31 = vld [vmem:[#allocation3 + $0x8] sm:$0xff]
    %v32 = vld [vmem:[#allocation3 + $0x10] sm:$0xff]
    %v33 = vld [vmem:[#allocation3 + $0x18] sm:$0xff]
    %v34 = vld [vmem:[#allocation3 + $0x20] sm:$0xff]
    %v35 = vld [vmem:[#allocation3 + $0x28] sm:$0xff]
    %v36 = vld [vmem:[#allocation3 + $0x30] sm:$0xff]
    %v37 = vld [vmem:[#allocation3 + $0x38] sm:$0xff]
    %v38 = vld [vmem:[#allocation3 + $0x40] sm:$0xff]
    %v39 = vld [vmem:[#allocation3 + $0x48] sm:$0xff]
    %v40 = vld [vmem:[#allocation3 + $0x50] sm:$0xff]
    %v41 = vld [vmem:[#allocation3 + $0x58] sm:$0xff]
    %v42 = vld [vmem:[#allocation3 + $0x60] sm:$0xff]
    %v43 = vld [vmem:[#allocation3 + $0x68] sm:$0xff]
    %v44 = vld [vmem:[#allocation3 + $0x70] sm:$0xff]
    %v45 = vld [vmem:[#allocation3 + $0x78] sm:$0xff]
    %s46 = sld [smem:[#allocation2]]
    %v47 = vld [vmem:[%s2] sm:$0x1]
    %v48 = vsub.f32 0.0, %v47
    %v50 = vlaneseq
    %v51 = vshrl.u32 %v50, 7
    %v52 = vsub.s32 0, %v51
    %v53 = vrot.slane %v48, %v52
    %v55 = vmax.f32 %v53, %v30
    %v56 = vmax.f32 %v53, %v31
    %v57 = vmax.f32 %v53, %v32
    %v58 = vmax.f32 %v53, %v33
    %v59 = vmax.f32 %v53, %v34
    %v60 = vmax.f32 %v53, %v35
    %v61 = vmax.f32 %v53, %v36
    %v62 = vmax.f32 %v53, %v37
    %v63 = vmax.f32 %v53, %v38
    %v64 = vmax.f32 %v53, %v39
    %v65 = vmax.f32 %v53, %v40
    %v66 = vmax.f32 %v53, %v41
    %v67 = vmax.f32 %v53, %v42
    %v68 = vmax.f32 %v53, %v43
    %v69 = vmax.f32 %v53, %v44
    %v70 = vmax.f32 %v53, %v45
    %v72 = vlaneseq
    %v73 = vshrl.u32 %v72, 7
    %v74 = vsub.s32 0, %v73
    %v75 = vrot.slane %v47, %v74
    %v77 = vmin.f32 %v75, %v55
    %v78 = vmin.f32 %v75, %v56
    %v79 = vmin.f32 %v75, %v57
    %v80 = vmin.f32 %v75, %v58
    %v81 = vmin.f32 %v75, %v59
    %v82 = vmin.f32 %v75, %v60
    %v83 = vmin.f32 %v75, %v61
    %v84 = vmin.f32 %v75, %v62
    %v85 = vmin.f32 %v75, %v63
    %v86 = vmin.f32 %v75, %v64
    %v87 = vmin.f32 %v75, %v65
    %v88 = vmin.f32 %v75, %v66
    %v89 = vmin.f32 %v75, %v67
    %v90 = vmin.f32 %v75, %v68
    %v91 = vmin.f32 %v75, %v69
    %v92 = vmin.f32 %v75, %v70
    %v93 = vsub.f32 %v30, %v77
    %v94 = vsub.f32 %v31, %v78
    %v95 = vsub.f32 %v32, %v79
    %v96 = vsub.f32 %v33, %v80
    %v97 = vsub.f32 %v34, %v81
    %v98 = vsub.f32 %v35, %v82
    %v99 = vsub.f32 %v36, %v83
    %v100 = vsub.f32 %v37, %v84
    %v101 = vsub.f32 %v38, %v85
    %v102 = vsub.f32 %v39, %v86
    %v103 = vsub.f32 %v40, %v87
    %v104 = vsub.f32 %v41, %v88
    %v105 = vsub.f32 %v42, %v89
    %v106 = vsub.f32 %v43, %v90
    %v107 = vsub.f32 %v44, %v91
    %v108 = vsub.f32 %v45, %v92
    %v109 = vstv %s46
    %v110 = vmul.f32 %v109, %v93
    %v111 = vmul.f32 %v109, %v94
    %v112 = vmul.f32 %v109, %v95
    %v113 = vmul.f32 %v109, %v96
    %v114 = vmul.f32 %v109, %v97
    %v115 = vmul.f32 %v109, %v98
    %v116 = vmul.f32 %v109, %v99
    %v117 = vmul.f32 %v109, %v100
    %v118 = vmul.f32 %v109, %v101
    %v119 = vmul.f32 %v109, %v102
    %v120 = vmul.f32 %v109, %v103
    %v121 = vmul.f32 %v109, %v104
    %v122 = vmul.f32 %v109, %v105
    %v123 = vmul.f32 %v109, %v106
    %v124 = vmul.f32 %v109, %v107
    %v125 = vmul.f32 %v109, %v108
    %126 = vst [vmem:[#allocation6] sm:$0xff] %v110
    %127 = vst [vmem:[#allocation6 + $0x8] sm:$0xff] %v111
    %128 = vst [vmem:[#allocation6 + $0x10] sm:$0xff] %v112
    %129 = vst [vmem:[#allocation6 + $0x18] sm:$0xff] %v113
    %130 = vst [vmem:[#allocation6 + $0x20] sm:$0xff] %v114
    %131 = vst [vmem:[#allocation6 + $0x28] sm:$0xff] %v115
    %132 = vst [vmem:[#allocation6 + $0x30] sm:$0xff] %v116
    %133 = vst [vmem:[#allocation6 + $0x38] sm:$0xff] %v117
    %134 = vst [vmem:[#allocation6 + $0x40] sm:$0xff] %v118
    %135 = vst [vmem:[#allocation6 + $0x48] sm:$0xff] %v119
    %136 = vst [vmem:[#allocation6 + $0x50] sm:$0xff] %v120
    %137 = vst [vmem:[#allocation6 + $0x58] sm:$0xff] %v121
    %138 = vst [vmem:[#allocation6 + $0x60] sm:$0xff] %v122
    %139 = vst [vmem:[#allocation6 + $0x68] sm:$0xff] %v123
    %140 = vst [vmem:[#allocation6 + $0x70] sm:$0xff] %v124
    %141 = vst [vmem:[#allocation6 + $0x78] sm:$0xff] %v125
    // Predicated region
    $region18: #{tpu_custom_call.1} parent=1 // pred_check
      _
    $region19: #{tpu_custom_call.1} parent=1 // pred_check_branch
      %143 = sbr.rel (0) target = $region21
    $region20: #{tpu_custom_call.1} parent=1 // pred_region
      %s145 = ssub.s32 2048, 2048
      %146 = vsyncadd [#allocation5], %s145
      %s147 = sshll.u32 [#allocation6], 4
      %s148 = int_to_ptr.vmem [resolvable:$true] %s147
      %153 = dma.vmem_to_hbm [thread:$0]  %s148, 2048, %s3, [#allocation5], 128, 128, 8
    $region21: #{tpu_custom_call.1} parent=1 // pred_fallthru
      _
    // Predicated region
    $region22: #{tpu_custom_call.1} parent=1 // pred_check
      _
    $region23: #{tpu_custom_call.1} parent=1 // pred_check_branch
      %155 = sbr.rel (0) target = $region25
    $region24: #{tpu_custom_call.1} parent=1 // pred_region
      %156 = dma.done [#allocation5], 2048
    $region25: #{tpu_custom_call.1} parent=1 // pred_fallthru
      _
    %157 = vsyncpa [#allocation4], 1
    %158 = vsyncpa [#allocation5], 1

</llo_original>
